<compile_context>
chip_gen: v6e
topology: v6e:2x2x1
jax: 0.10.0
libtpu: 0.0.40
codegen_flags: <defaults>
</compile_context>

<pallas_src>
import functools

import jax
import jax.numpy as jnp
from jax.experimental import pallas as pl
from jax.experimental.pallas import tpu as pltpu


def _mlp_kernel(x_ref, w1_ref, b1_ref, w23_ref, b3_ref, o_ref, *,
                use_bf16_matmul):
    x = x_ref[...]
    w1 = w1_ref[...]
    if use_bf16_matmul:
        x = x.astype(jnp.bfloat16)
        w1 = w1.astype(jnp.bfloat16)
    # fc1 + bias + sigmoid (EUP exp + fast reciprocal path).
    h = jnp.dot(x, w1, preferred_element_type=jnp.float32)
    h = jax.nn.sigmoid(h + b1_ref[...])
    # fc2 @ fc3 folded into one (32, n_pad) matrix in the wrapper.
    w23 = w23_ref[...]
    if use_bf16_matmul:
        h = h.astype(jnp.bfloat16)
        w23 = w23.astype(jnp.bfloat16)
    y = jnp.dot(h, w23, preferred_element_type=jnp.float32)
    o_ref[...] = (y + b3_ref[...]).astype(o_ref.dtype)


def _pick_tile_rows(batch, row_bytes, *, tile_bytes=8 << 20):
    """Rows of x per grid step, targeting ~tile_bytes of x per tile.

    Byte-capped (not row-capped) so small input_size still gets large tiles;
    rows are a multiple of 8 (sublane).  8 MiB double-buffered = 16 MiB, which
    fits the scoped-VMEM budget we request on every TPU generation.  If the
    whole batch would fit in one tile and has >= 16 rows, split into >= 2
    tiles so the "parallel" batch axis can span both v7x TensorCores.
    """
    tb = max(8, (tile_bytes // max(row_bytes, 1)) // 8 * 8)
    b8 = max(8, -(-batch // 8) * 8)
    tb = min(tb, b8)
    if tb >= batch and batch >= 16:
        half = max(8, -(-((batch + 1) // 2) // 8) * 8)
        tb = min(tb, half)
    return tb


def _resident_spec(shape):
    """BlockSpec for a constant-index (never re-DMA'd) operand.

    Single-buffered so weights don't pay double-buffer VMEM; falls back to
    default pipelining on older Pallas versions without pipeline_mode.
    """
    index_map = lambda i: (0, 0)
    try:
        return pl.BlockSpec(shape, index_map, pipeline_mode=pl.Buffered(1))
    except (AttributeError, TypeError):
        return pl.BlockSpec(shape, index_map)


def _vmem_limit_bytes(x_tile_bytes, out_tile_bytes, weight_bytes):
    # x and out are double-buffered by the pipeline; weights are resident once.
    needed = 2 * x_tile_bytes + 2 * out_tile_bytes + weight_bytes
    # Headroom for compiler temporaries; cap at 64 MiB so the request is valid
    # on v7x (64 MiB physical/TC) as well as v5e/v6e (128 MiB).
    return int(min(max(needed + (8 << 20), 32 << 20), 64 << 20))


def mlp_2_sigmo_forward(x, params, *, use_bf16_matmul=False):
    """x: any shape whose elements flatten to (B, input_size)."""
    w1, b1, w2, w3, b3 = params
    input_size = w1.shape[0]
    num_classes = w3.shape[1]

    # x.view(-1, input_size); keep native dtype -- any upcast happens on-chip
    # inside the kernel, so HBM streams x exactly once at its stored width.
    x2d = x.reshape(-1, input_size)
    B = x2d.shape[0]

    # Fold the two linear layers without a nonlinearity between them
    # (tiny 32x64x num_classes matmul, done once in the wrapper).
    w23 = jnp.dot(w2.astype(jnp.float32), w3.astype(jnp.float32),
                  preferred_element_type=jnp.float32)       # (32, num_classes)

    # Lane-dense output: pad the class dim to a multiple of 128 so the kernel
    # emits unmasked full-lane stores; sliced back below.
    n_pad = -(-num_classes // 128) * 128
    if n_pad != num_classes:
        w23 = jnp.pad(w23, ((0, 0), (0, n_pad - num_classes)))
        b3p = jnp.pad(b3, ((0, 0), (0, n_pad - num_classes)))
    else:
        b3p = b3

    TB = _pick_tile_rows(B, input_size * x2d.dtype.itemsize)
    n_blocks = pl.cdiv(B, TB)

    weight_bytes = (w1.size * w1.dtype.itemsize
                    + b1.size * b1.dtype.itemsize
                    + w23.size * w23.dtype.itemsize
                    + b3p.size * b3p.dtype.itemsize)
    vmem_limit = _vmem_limit_bytes(
        x_tile_bytes=TB * input_size * x2d.dtype.itemsize,
        out_tile_bytes=TB * n_pad * 4,
        weight_bytes=weight_bytes)

    out_dtype = jnp.result_type(x2d.dtype, w1.dtype)
    kernel = functools.partial(_mlp_kernel, use_bf16_matmul=use_bf16_matmul)

    out = pl.pallas_call(
        kernel,
        out_shape=jax.ShapeDtypeStruct((B, n_pad), out_dtype),
        grid=(n_blocks,),
        in_specs=[
            pl.BlockSpec((TB, input_size), lambda i: (i, 0)),  # x: streamed,
            _resident_spec(w1.shape),                          #   double-buffered
            _resident_spec(b1.shape),                          # weights/biases:
            _resident_spec(w23.shape),                         #   resident once,
            _resident_spec(b3p.shape),                         #   single-buffered
        ],
        out_specs=pl.BlockSpec((TB, n_pad), lambda i: (i, 0)),
        compiler_params=pltpu.CompilerParams(
            dimension_semantics=("parallel",),
            vmem_limit_bytes=vmem_limit),
    )(x2d, w1, b1, w23, b3p)

    return out[:, :num_classes] if n_pad != num_classes else out


def init_params(key, input_size, num_classes):
    """Deterministic init mimicking torch.nn.Linear default
    (U[-1/sqrt(fan_in), 1/sqrt(fan_in)]). Weights stored (in, out) so every
    layer is a plain `x @ W` on the MXU; biases are (1, out)."""
    k1, k2, k3, k4, k5 = jax.random.split(key, 5)

    def u(k, shape, fan_in):
        bound = 1.0 / jnp.sqrt(jnp.float32(fan_in))
        return jax.random.uniform(k, shape, jnp.float32, -bound, bound)

    w1 = u(k1, (input_size, 32), input_size)
    b1 = u(k2, (1, 32), input_size)
    w2 = u(k3, (32, 64), 32)            # fc2: bias=False
    w3 = u(k4, (64, num_classes), 64)
    b3 = u(k5, (1, num_classes), 64)
    return (w1, b1, w2, w3, b3)


if __name__ == "__main__":
    key = jax.random.PRNGKey(0)
    kx, kp = jax.random.split(key)

    # Small NCHW-style input: batch=2, channels=4, spatial=16x16
    # => input_size = 4*16*16 = 1024, num_classes = 10
    B, C, H, W = 2, 4, 16, 16
    input_size = C * H * W
    num_classes = 10

    x = jax.random.normal(kx, (B, C, H, W), jnp.float32)
    params = init_params(kp, input_size, num_classes)

    y = mlp_2_sigmo_forward(x, params)
    y = jax.block_until_ready(y)

    # Pure-JAX reference (unfolded 3-matmul path, like the PyTorch module).
    w1, b1, w2, w3, b3 = params
    x2d = x.reshape(-1, input_size)
    ref = jax.nn.sigmoid(x2d @ w1 + b1) @ w2 @ w3 + b3
    assert y.shape == (B, num_classes)
    # Tolerance relaxed slightly vs 1e-5 because fc2@fc3 is folded (f32 rounding).
    assert jnp.allclose(y, ref, atol=1e-4, rtol=1e-4)

    print("KERNEL_OK")
</pallas_src>

<mosaic_0001>
module attributes {stable_mosaic.version = 11 : i64} {
  func.func @_mlp_kernel(%arg0: i32, %arg1: memref<8x1024xf32, #tpu.memory_space<vmem>>, %arg2: memref<1024x32xf32, #tpu.memory_space<vmem>>, %arg3: memref<1x32xf32, #tpu.memory_space<vmem>>, %arg4: memref<32x128xf32, #tpu.memory_space<vmem>>, %arg5: memref<1x128xf32, #tpu.memory_space<vmem>>, %arg6: memref<8x128xf32, #tpu.memory_space<vmem>>) attributes {dimension_semantics = [#tpu.dimension_semantics<parallel>], iteration_bounds = array<i64: 1>, scalar_prefetch = 0 : i64, scratch_operands = 0 : i64, tpu.core_type = #tpu.core_type<tc>, window_params = [{transform_indices = @transform_0, window_bounds = array<i64: 8, 1024>}, {pipeline_mode = #tpu.pipeline_mode<synchronous>, transform_indices = @transform_1, window_bounds = array<i64: 1024, 32>}, {pipeline_mode = #tpu.pipeline_mode<synchronous>, transform_indices = @transform_2, window_bounds = array<i64: 1, 32>}, {pipeline_mode = #tpu.pipeline_mode<synchronous>, transform_indices = @transform_3, window_bounds = array<i64: 32, 128>}, {pipeline_mode = #tpu.pipeline_mode<synchronous>, transform_indices = @transform_4, window_bounds = array<i64: 1, 128>}, {transform_indices = @transform_5, window_bounds = array<i64: 8, 128>}]} {
    %c0 = arith.constant 0 : index
    %c0_0 = arith.constant 0 : index
    %0 = vector.load %arg1[%c0, %c0_0] : memref<8x1024xf32, #tpu.memory_space<vmem>>, vector<8x1024xf32>
    %c0_1 = arith.constant 0 : index
    %c0_2 = arith.constant 0 : index
    %1 = vector.load %arg2[%c0_1, %c0_2] : memref<1024x32xf32, #tpu.memory_space<vmem>>, vector<1024x32xf32>
    %cst = arith.constant dense<0.000000e+00> : vector<8x32xf32>
    %2 = tpu.matmul %0, %1, %cst {dimension_numbers = #tpu.dot_dimension_numbers<[1], [0], [0], [1], [0, 0, 1, 1], [], []>} : vector<8x1024xf32>, vector<1024x32xf32>, vector<8x32xf32> -> vector<8x32xf32>
    %c0_3 = arith.constant 0 : index
    %c0_4 = arith.constant 0 : index
    %3 = vector.load %arg3[%c0_3, %c0_4] : memref<1x32xf32, #tpu.memory_space<vmem>>, vector<1x32xf32>
    %4 = vector.broadcast %3 : vector<1x32xf32> to vector<8x32xf32>
    %5 = arith.addf %2, %4 : vector<8x32xf32>
    %6 = arith.negf %5 : vector<8x32xf32>
    %7 = math.exp %6 : vector<8x32xf32>
    %cst_5 = arith.constant 1.000000e+00 : f32
    %8 = vector.broadcast %cst_5 : f32 to vector<8x32xf32>
    %9 = arith.addf %8, %7 : vector<8x32xf32>
    %10 = arith.divf %8, %9 : vector<8x32xf32>
    %c0_6 = arith.constant 0 : index
    %c0_7 = arith.constant 0 : index
    %11 = vector.load %arg4[%c0_6, %c0_7] : memref<32x128xf32, #tpu.memory_space<vmem>>, vector<32x128xf32>
    %cst_8 = arith.constant dense<0.000000e+00> : vector<8x128xf32>
    %12 = tpu.matmul %10, %11, %cst_8 {dimension_numbers = #tpu.dot_dimension_numbers<[1], [0], [0], [1], [0, 0, 1, 1], [], []>} : vector<8x32xf32>, vector<32x128xf32>, vector<8x128xf32> -> vector<8x128xf32>
    %c0_9 = arith.constant 0 : index
    %c0_10 = arith.constant 0 : index
    %13 = vector.load %arg5[%c0_9, %c0_10] : memref<1x128xf32, #tpu.memory_space<vmem>>, vector<1x128xf32>
    %14 = vector.broadcast %13 : vector<1x128xf32> to vector<8x128xf32>
    %15 = arith.addf %12, %14 : vector<8x128xf32>
    %c0_11 = arith.constant 0 : index
    %c0_12 = arith.constant 0 : index
    %16 = vector.load %arg6[%c0_11, %c0_12] : memref<8x128xf32, #tpu.memory_space<vmem>>, vector<8x128xf32>
    tpu.vector_store %arg6[%c0_11, %c0_12], %15 {strides = array<i32>} : memref<8x128xf32, #tpu.memory_space<vmem>>, vector<8x128xf32>,
    return
  }
  func.func @transform_0(%arg0: i32) -> (i32, i32) {
    %c0_i32 = arith.constant 0 : i32
    %c0_i32_0 = arith.constant 0 : i32
    return %arg0, %c0_i32 : i32, i32
  }
  func.func @transform_1(%arg0: i32) -> (i32, i32) {
    %c0_i32 = arith.constant 0 : i32
    %c0_i32_0 = arith.constant 0 : i32
    %c0_i32_1 = arith.constant 0 : i32
    return %c0_i32, %c0_i32_0 : i32, i32
  }
  func.func @transform_2(%arg0: i32) -> (i32, i32) {
    %c0_i32 = arith.constant 0 : i32
    %c0_i32_0 = arith.constant 0 : i32
    %c0_i32_1 = arith.constant 0 : i32
    return %c0_i32, %c0_i32_0 : i32, i32
  }
  func.func @transform_3(%arg0: i32) -> (i32, i32) {
    %c0_i32 = arith.constant 0 : i32
    %c0_i32_0 = arith.constant 0 : i32
    %c0_i32_1 = arith.constant 0 : i32
    return %c0_i32, %c0_i32_0 : i32, i32
  }
  func.func @transform_4(%arg0: i32) -> (i32, i32) {
    %c0_i32 = arith.constant 0 : i32
    %c0_i32_0 = arith.constant 0 : i32
    %c0_i32_1 = arith.constant 0 : i32
    return %c0_i32, %c0_i32_0 : i32, i32
  }
  func.func @transform_5(%arg0: i32) -> (i32, i32) {
    %c0_i32 = arith.constant 0 : i32
    %c0_i32_0 = arith.constant 0 : i32
    return %arg0, %c0_i32 : i32, i32
  }
}

</mosaic_0001>

<llo_original>
// kernel: tpu_custom_call.1
$region0: #{tpu_custom_call.1}
  #allocation0 [shape = 'u32[]', space=smem, size = 0x4, offset = 0x4, fixed_abs, tag = 'smem constant byte address 0x4 - core index']
  #allocation1 [shape = 'u32[144,128]{1,0:T(1,128)}', space=vmem, size = 0x12000, scoped, tag = 'internal scratch']
  %s0 = inlined_call_operand.vmem [shape: f32[2,1024], index: 0, kind: input, shape index: {}]
  %s1 = inlined_call_operand.vmem [shape: f32[1024,32], index: 1, kind: input, shape index: {}]
  %s2 = inlined_call_operand.vmem [shape: f32[1,32], index: 2, kind: input, shape index: {}]
  %s3 = inlined_call_operand.vmem [shape: f32[32,128], index: 3, kind: input, shape index: {}]
  %s4 = inlined_call_operand.vmem [shape: f32[1,128], index: 4, kind: input, shape index: {}]
  %s5 = inlined_call_operand.hbm [shape: f32[2,128], index: 5, kind: output, shape index: {}]
  %s6 = sld [smem:[#allocation0]]
  $region30: #{tpu_custom_call.1} parent=0
    _
  %s8 = ssub.s32 1, %s6
  %s9 = scalar_select 0, %s8, %s6
  $region1: #{tpu_custom_call.1} parent=0
    #allocation2 [shape = 'u8[4096]{0}', space=vmem, size = 0x1000, scoped, tag = 'output window, operand 0, single buffered']
    #allocation3 [shape = 's32[1]{0}', space=sflag, size = 0x4, scoped, tag = 'scoped memory for tpu_custom_call.1']
    %10 = vsyncpa [#allocation3], 0
    // Predicated region
    $region2: #{tpu_custom_call.1} parent=1 // pred_check
      _
    $region3: #{tpu_custom_call.1} parent=1 // pred_check_branch
      %12 = sbr.rel (0) target = $region5
    $region4: #{tpu_custom_call.1} parent=1 // pred_region
      _
    $region5: #{tpu_custom_call.1} parent=1 // pred_fallthru
      _
    // Predicated region
    $region6: #{tpu_custom_call.1} parent=1 // pred_check
      _
    $region7: #{tpu_custom_call.1} parent=1 // pred_check_branch
      %14 = sbr.rel (0) target = $region9
    $region8: #{tpu_custom_call.1} parent=1 // pred_region
      _
    $region9: #{tpu_custom_call.1} parent=1 // pred_fallthru
      _
    // Predicated region
    $region10: #{tpu_custom_call.1} parent=1 // pred_check
      _
    $region11: #{tpu_custom_call.1} parent=1 // pred_check_branch
      %16 = sbr.rel (0) target = $region13
    $region12: #{tpu_custom_call.1} parent=1 // pred_region
      _
    $region13: #{tpu_custom_call.1} parent=1 // pred_fallthru
      _
    // Predicated region
    $region14: #{tpu_custom_call.1} parent=1 // pred_check
      _
    $region15: #{tpu_custom_call.1} parent=1 // pred_check_branch
      %18 = sbr.rel (0) target = $region17
    $region16: #{tpu_custom_call.1} parent=1 // pred_region
      _
    $region17: #{tpu_custom_call.1} parent=1 // pred_fallthru
      _
    // Predicated region
    $region18: #{tpu_custom_call.1} parent=1 // pred_check
      _
    $region19: #{tpu_custom_call.1} parent=1 // pred_check_branch
      %20 = sbr.rel (0) target = $region21
    $region20: #{tpu_custom_call.1} parent=1 // pred_region
      _
    $region21: #{tpu_custom_call.1} parent=1 // pred_fallthru
      _
    %v21 = vld [vmem:[%s0] sm:$0xff]
    %v22 = vld [vmem:[%s0 + $0x8] sm:$0xff]
    %v23 = vld [vmem:[%s0 + $0x10] sm:$0xff]
    %v24 = vld [vmem:[%s0 + $0x18] sm:$0xff]
    %v25 = vld [vmem:[%s0 + $0x20] sm:$0xff]
    %v26 = vld [vmem:[%s0 + $0x28] sm:$0xff]
    %v27 = vld [vmem:[%s0 + $0x30] sm:$0xff]
    %v28 = vld [vmem:[%s0 + $0x38] sm:$0xff]
    %v29 = vld [vmem:[%s1] sm:$0xff]
    %v30 = vld [vmem:[%s1 + $0x8] sm:$0xff]
    %v31 = vld [vmem:[%s1 + $0x10] sm:$0xff]
    %v32 = vld [vmem:[%s1 + $0x18] sm:$0xff]
    %v33 = vld [vmem:[%s1 + $0x20] sm:$0xff]
    %v34 = vld [vmem:[%s1 + $0x28] sm:$0xff]
    %v35 = vld [vmem:[%s1 + $0x30] sm:$0xff]
    %v36 = vld [vmem:[%s1 + $0x38] sm:$0xff]
    %v37 = vld [vmem:[%s1 + $0x40] sm:$0xff]
    %v38 = vld [vmem:[%s1 + $0x48] sm:$0xff]
    %v39 = vld [vmem:[%s1 + $0x50] sm:$0xff]
    %v40 = vld [vmem:[%s1 + $0x58] sm:$0xff]
    %v41 = vld [vmem:[%s1 + $0x60] sm:$0xff]
    %v42 = vld [vmem:[%s1 + $0x68] sm:$0xff]
    %v43 = vld [vmem:[%s1 + $0x70] sm:$0xff]
    %v44 = vld [vmem:[%s1 + $0x78] sm:$0xff]
    %v45 = vld [vmem:[%s1 + $0x80] sm:$0xff]
    %v46 = vld [vmem:[%s1 + $0x88] sm:$0xff]
    %v47 = vld [vmem:[%s1 + $0x90] sm:$0xff]
    %v48 = vld [vmem:[%s1 + $0x98] sm:$0xff]
    %v49 = vld [vmem:[%s1 + $0xa0] sm:$0xff]
    %v50 = vld [vmem:[%s1 + $0xa8] sm:$0xff]
    %v51 = vld [vmem:[%s1 + $0xb0] sm:$0xff]
    %v52 = vld [vmem:[%s1 + $0xb8] sm:$0xff]
    %v53 = vld [vmem:[%s1 + $0xc0] sm:$0xff]
    %v54 = vld [vmem:[%s1 + $0xc8] sm:$0xff]
    %v55 = vld [vmem:[%s1 + $0xd0] sm:$0xff]
    %v56 = vld [vmem:[%s1 + $0xd8] sm:$0xff]
    %v57 = vld [vmem:[%s1 + $0xe0] sm:$0xff]
    %v58 = vld [vmem:[%s1 + $0xe8] sm:$0xff]
    %v59 = vld [vmem:[%s1 + $0xf0] sm:$0xff]
    %v60 = vld [vmem:[%s1 + $0xf8] sm:$0xff]
    %v61 = vld [vmem:[%s1 + $0x100] sm:$0xff]
    %v62 = vld [vmem:[%s1 + $0x108] sm:$0xff]
    %v63 = vld [vmem:[%s1 + $0x110] sm:$0xff]
    %v64 = vld [vmem:[%s1 + $0x118] sm:$0xff]
    %v65 = vld [vmem:[%s1 + $0x120] sm:$0xff]
    %v66 = vld [vmem:[%s1 + $0x128] sm:$0xff]
    %v67 = vld [vmem:[%s1 + $0x130] sm:$0xff]
    %v68 = vld [vmem:[%s1 + $0x138] sm:$0xff]
    %v69 = vld [vmem:[%s1 + $0x140] sm:$0xff]
    %v70 = vld [vmem:[%s1 + $0x148] sm:$0xff]
    %v71 = vld [vmem:[%s1 + $0x150] sm:$0xff]
    %v72 = vld [vmem:[%s1 + $0x158] sm:$0xff]
    %v73 = vld [vmem:[%s1 + $0x160] sm:$0xff]
    %v74 = vld [vmem:[%s1 + $0x168] sm:$0xff]
    %v75 = vld [vmem:[%s1 + $0x170] sm:$0xff]
    %v76 = vld [vmem:[%s1 + $0x178] sm:$0xff]
    %v77 = vld [vmem:[%s1 + $0x180] sm:$0xff]
    %v78 = vld [vmem:[%s1 + $0x188] sm:$0xff]
    %v79 = vld [vmem:[%s1 + $0x190] sm:$0xff]
    %v80 = vld [vmem:[%s1 + $0x198] sm:$0xff]
    %v81 = vld [vmem:[%s1 + $0x1a0] sm:$0xff]
    %v82 = vld [vmem:[%s1 + $0x1a8] sm:$0xff]
    %v83 = vld [vmem:[%s1 + $0x1b0] sm:$0xff]
    %v84 = vld [vmem:[%s1 + $0x1b8] sm:$0xff]
    %v85 = vld [vmem:[%s1 + $0x1c0] sm:$0xff]
    %v86 = vld [vmem:[%s1 + $0x1c8] sm:$0xff]
    %v87 = vld [vmem:[%s1 + $0x1d0] sm:$0xff]
    %v88 = vld [vmem:[%s1 + $0x1d8] sm:$0xff]
    %v89 = vld [vmem:[%s1 + $0x1e0] sm:$0xff]
    %v90 = vld [vmem:[%s1 + $0x1e8] sm:$0xff]
    %v91 = vld [vmem:[%s1 + $0x1f0] sm:$0xff]
    %v92 = vld [vmem:[%s1 + $0x1f8] sm:$0xff]
    %v93 = vld [vmem:[%s1 + $0x200] sm:$0xff]
    %v94 = vld [vmem:[%s1 + $0x208] sm:$0xff]
    %v95 = vld [vmem:[%s1 + $0x210] sm:$0xff]
    %v96 = vld [vmem:[%s1 + $0x218] sm:$0xff]
    %v97 = vld [vmem:[%s1 + $0x220] sm:$0xff]
    %v98 = vld [vmem:[%s1 + $0x228] sm:$0xff]
    %v99 = vld [vmem:[%s1 + $0x230] sm:$0xff]
    %v100 = vld [vmem:[%s1 + $0x238] sm:$0xff]
    %v101 = vld [vmem:[%s1 + $0x240] sm:$0xff]
    %v102 = vld [vmem:[%s1 + $0x248] sm:$0xff]
    %v103 = vld [vmem:[%s1 + $0x250] sm:$0xff]
    %v104 = vld [vmem:[%s1 + $0x258] sm:$0xff]
    %v105 = vld [vmem:[%s1 + $0x260] sm:$0xff]
    %v106 = vld [vmem:[%s1 + $0x268] sm:$0xff]
    %v107 = vld [vmem:[%s1 + $0x270] sm:$0xff]
    %v108 = vld [vmem:[%s1 + $0x278] sm:$0xff]
    %v109 = vld [vmem:[%s1 + $0x280] sm:$0xff]
    %v110 = vld [vmem:[%s1 + $0x288] sm:$0xff]
    %v111 = vld [vmem:[%s1 + $0x290] sm:$0xff]
    %v112 = vld [vmem:[%s1 + $0x298] sm:$0xff]
    %v113 = vld [vmem:[%s1 + $0x2a0] sm:$0xff]
    %v114 = vld [vmem:[%s1 + $0x2a8] sm:$0xff]
    %v115 = vld [vmem:[%s1 + $0x2b0] sm:$0xff]
    %v116 = vld [vmem:[%s1 + $0x2b8] sm:$0xff]
    %v117 = vld [vmem:[%s1 + $0x2c0] sm:$0xff]
    %v118 = vld [vmem:[%s1 + $0x2c8] sm:$0xff]
    %v119 = vld [vmem:[%s1 + $0x2d0] sm:$0xff]
    %v120 = vld [vmem:[%s1 + $0x2d8] sm:$0xff]
    %v121 = vld [vmem:[%s1 + $0x2e0] sm:$0xff]
    %v122 = vld [vmem:[%s1 + $0x2e8] sm:$0xff]
    %v123 = vld [vmem:[%s1 + $0x2f0] sm:$0xff]
    %v124 = vld [vmem:[%s1 + $0x2f8] sm:$0xff]
    %v125 = vld [vmem:[%s1 + $0x300] sm:$0xff]
    %v126 = vld [vmem:[%s1 + $0x308] sm:$0xff]
    %v127 = vld [vmem:[%s1 + $0x310] sm:$0xff]
    %v128 = vld [vmem:[%s1 + $0x318] sm:$0xff]
    %v129 = vld [vmem:[%s1 + $0x320] sm:$0xff]
    %v130 = vld [vmem:[%s1 + $0x328] sm:$0xff]
    %v131 = vld [vmem:[%s1 + $0x330] sm:$0xff]
    %v132 = vld [vmem:[%s1 + $0x338] sm:$0xff]
    %v133 = vld [vmem:[%s1 + $0x340] sm:$0xff]
    %v134 = vld [vmem:[%s1 + $0x348] sm:$0xff]
    %v135 = vld [vmem:[%s1 + $0x350] sm:$0xff]
    %v136 = vld [vmem:[%s1 + $0x358] sm:$0xff]
    %v137 = vld [vmem:[%s1 + $0x360] sm:$0xff]
    %v138 = vld [vmem:[%s1 + $0x368] sm:$0xff]
    %v139 = vld [vmem:[%s1 + $0x370] sm:$0xff]
    %v140 = vld [vmem:[%s1 + $0x378] sm:$0xff]
    %v141 = vld [vmem:[%s1 + $0x380] sm:$0xff]
    %v142 = vld [vmem:[%s1 + $0x388] sm:$0xff]
    %v143 = vld [vmem:[%s1 + $0x390] sm:$0xff]
    %v144 = vld [vmem:[%s1 + $0x398] sm:$0xff]
    %v145 = vld [vmem:[%s1 + $0x3a0] sm:$0xff]
    %v146 = vld [vmem:[%s1 + $0x3a8] sm:$0xff]
    %v147 = vld [vmem:[%s1 + $0x3b0] sm:$0xff]
    %v148 = vld [vmem:[%s1 + $0x3b8] sm:$0xff]
    %v149 = vld [vmem:[%s1 + $0x3c0] sm:$0xff]
    %v150 = vld [vmem:[%s1 + $0x3c8] sm:$0xff]
    %v151 = vld [vmem:[%s1 + $0x3d0] sm:$0xff]
    %v152 = vld [vmem:[%s1 + $0x3d8] sm:$0xff]
    %v153 = vld [vmem:[%s1 + $0x3e0] sm:$0xff]
    %v154 = vld [vmem:[%s1 + $0x3e8] sm:$0xff]
    %v155 = vld [vmem:[%s1 + $0x3f0] sm:$0xff]
    %v156 = vld [vmem:[%s1 + $0x3f8] sm:$0xff]
    %v157 = vld [vmem:[%s2] sm:$0x1]
    %v159 = vlaneseq
    %v160 = vshrl.u32 %v159, 7
    %v161 = vsub.s32 0, %v160
    %v162 = vrot.slane %v157, %v161
    %v172 = vcombine.low %v21, %v23
    %v173 = vcombine.high %v21, %v23
    %v174 = vcombine.low %v25, %v27
    %v175 = vcombine.high %v25, %v27
    %v177 = vunpack.c.l.s4 1983009808
    %v178 = vunpack.c.0.s8 %v177
    %v179 = vlaneseq
    %v180 = vshrl.u32 %v179, 7
    %v181 = vsub.s32 %v178, %v180
    %v182 = vrot.slane %v172, %v181
    %v184 = vunpack.c.l.s4 1983009808
    %v185 = vunpack.c.0.s8 %v184
    %v186 = vlaneseq
    %v187 = vshrl.u32 %v186, 7
    %v188 = vsub.s32 %v185, %v187
    %v189 = vrot.slane %v173, %v188
    %v191 = vunpack.c.l.s4 1983009808
    %v192 = vunpack.c.0.s8 %v191
    %v193 = vlaneseq
    %v194 = vshrl.u32 %v193, 7
    %v195 = vsub.s32 %v192, %v194
    %v196 = vrot.slane %v174, %v195
    %v198 = vunpack.c.l.s4 1983009808
    %v199 = vunpack.c.0.s8 %v198
    %v200 = vlaneseq
    %v201 = vshrl.u32 %v200, 7
    %v202 = vsub.s32 %v199, %v201
    %v203 = vrot.slane %v175, %v202
    %v204 = vcombine.low %v182, %v196
    %v205 = vcombine.high %v182, %v196
    %v206 = vcombine.low %v189, %v203
    %v207 = vcombine.high %v189, %v203
    %v208 = vcombine.low %v22, %v24
    %v209 = vcombine.high %v22, %v24
    %v210 = vcombine.low %v26, %v28
    %v211 = vcombine.high %v26, %v28
    %v213 = vunpack.c.l.s4 1983009808
    %v214 = vunpack.c.0.s8 %v213
    %v215 = vlaneseq
    %v216 = vshrl.u32 %v215, 7
    %v217 = vsub.s32 %v214, %v216
    %v218 = vrot.slane %v208, %v217
    %v220 = vunpack.c.l.s4 1983009808
    %v221 = vunpack.c.0.s8 %v220
    %v222 = vlaneseq
    %v223 = vshrl.u32 %v222, 7
    %v224 = vsub.s32 %v221, %v223
    %v225 = vrot.slane %v209, %v224
    %v227 = vunpack.c.l.s4 1983009808
    %v228 = vunpack.c.0.s8 %v227
    %v229 = vlaneseq
    %v230 = vshrl.u32 %v229, 7
    %v231 = vsub.s32 %v228, %v230
    %v232 = vrot.slane %v210, %v231
    %v234 = vunpack.c.l.s4 1983009808
    %v235 = vunpack.c.0.s8 %v234
    %v236 = vlaneseq
    %v237 = vshrl.u32 %v236, 7
    %v238 = vsub.s32 %v235, %v237
    %v239 = vrot.slane %v211, %v238
    %v240 = vcombine.low %v218, %v232
    %v241 = vcombine.high %v218, %v232
    %v242 = vcombine.low %v225, %v239
    %v243 = vcombine.high %v225, %v239
    %252 = vmatprep.subr.mxu0 0.0
    %253 = vmatpush1.msra.mxu0 %v44
    %254 = vmatprep.subr.mxu0 0.0
    %255 = vmatpush1.msra.mxu0 %v43
    %256 = vmatprep.subr.mxu0 0.0
    %257 = vmatpush1.msra.mxu0 %v42
    %258 = vmatprep.subr.mxu0 0.0
    %259 = vmatpush1.msra.mxu0 %v41
    %260 = vmatprep.subr.mxu0 0.0
    %261 = vmatpush1.msra.mxu0 %v40
    %262 = vmatprep.subr.mxu0 0.0
    %263 = vmatpush1.msra.mxu0 %v39
    %264 = vmatprep.subr.mxu0 0.0
    %265 = vmatpush1.msra.mxu0 %v38
    %266 = vmatprep.subr.mxu0 0.0
    %267 = vmatpush1.msra.mxu0 %v37
    %268 = vmatprep.subr.mxu0 0.0
    %269 = vmatpush1.msra.mxu0 %v36
    %270 = vmatprep.subr.mxu0 0.0
    %271 = vmatpush1.msra.mxu0 %v35
    %272 = vmatprep.subr.mxu0 0.0
    %273 = vmatpush1.msra.mxu0 %v34
    %274 = vmatprep.subr.mxu0 0.0
    %275 = vmatpush1.msra.mxu0 %v33
    %276 = vmatprep.subr.mxu0 0.0
    %277 = vmatpush1.msra.mxu0 %v32
    %278 = vmatprep.subr.mxu0 0.0
    %279 = vmatpush1.msra.mxu0 %v31
    %280 = vmatprep.subr.mxu0 0.0
    %281 = vmatpush1.msra.mxu0 %v30
    %282 = vmatprep.subr.mxu0 0.0
    %283 = vmatpush1.msra.mxu0 %v29
    %284 = vmatprep.subr.mxu0 0.0
    %285 = vmatpush2.msra.mxu0 %v60
    %286 = vmatprep.subr.mxu0 0.0
    %287 = vmatpush2.msra.mxu0 %v59
    %288 = vmatprep.subr.mxu0 0.0
    %289 = vmatpush2.msra.mxu0 %v58
    %290 = vmatprep.subr.mxu0 0.0
    %291 = vmatpush2.msra.mxu0 %v57
    %292 = vmatprep.subr.mxu0 0.0
    %293 = vmatpush2.msra.mxu0 %v56
    %294 = vmatprep.subr.mxu0 0.0
    %295 = vmatpush2.msra.mxu0 %v55
    %296 = vmatprep.subr.mxu0 0.0
    %297 = vmatpush2.msra.mxu0 %v54
    %298 = vmatprep.subr.mxu0 0.0
    %299 = vmatpush2.msra.mxu0 %v53
    %300 = vmatprep.subr.mxu0 0.0
    %301 = vmatpush2.msra.mxu0 %v52
    %302 = vmatprep.subr.mxu0 0.0
    %303 = vmatpush2.msra.mxu0 %v51
    %304 = vmatprep.subr.mxu0 0.0
    %305 = vmatpush2.msra.mxu0 %v50
    %306 = vmatprep.subr.mxu0 0.0
    %307 = vmatpush2.msra.mxu0 %v49
    %308 = vmatprep.subr.mxu0 0.0
    %309 = vmatpush2.msra.mxu0 %v48
    %310 = vmatprep.subr.mxu0 0.0
    %311 = vmatpush2.msra.mxu0 %v47
    %312 = vmatprep.subr.mxu0 0.0
    %313 = vmatpush2.msra.mxu0 %v46
    %314 = vmatprep.subr.mxu0 0.0
    %315 = vmatpush2.msra.mxu0 %v45
    %316 = vmatprep.mubr.f32.mxu0 %v205
    %317 = vmatmul.mubr.f32.gmra.mxu0 %v204
    %v318 = vpop.f32.mrf.mxu0
    %v319 = vadd.f32 %v162, %v318
    %v320 = vpop.f32.mrf.mxu0
    %321 = vdwg.mxu0
    %322 = vmatprep.subr.mxu0 0.0
    %323 = vmatpush1.msra.mxu0 %v76
    %324 = vmatprep.subr.mxu0 0.0
    %325 = vmatpush1.msra.mxu0 %v75
    %326 = vmatprep.subr.mxu0 0.0
    %327 = vmatpush1.msra.mxu0 %v74
    %328 = vmatprep.subr.mxu0 0.0
    %329 = vmatpush1.msra.mxu0 %v73
    %330 = vmatprep.subr.mxu0 0.0
    %331 = vmatpush1.msra.mxu0 %v72
    %332 = vmatprep.subr.mxu0 0.0
    %333 = vmatpush1.msra.mxu0 %v71
    %334 = vmatprep.subr.mxu0 0.0
    %335 = vmatpush1.msra.mxu0 %v70
    %336 = vmatprep.subr.mxu0 0.0
    %337 = vmatpush1.msra.mxu0 %v69
    %338 = vmatprep.subr.mxu0 0.0
    %339 = vmatpush1.msra.mxu0 %v68
    %340 = vmatprep.subr.mxu0 0.0
    %341 = vmatpush1.msra.mxu0 %v67
    %342 = vmatprep.subr.mxu0 0.0
    %343 = vmatpush1.msra.mxu0 %v66
    %344 = vmatprep.subr.mxu0 0.0
    %345 = vmatpush1.msra.mxu0 %v65
    %346 = vmatprep.subr.mxu0 0.0
    %347 = vmatpush1.msra.mxu0 %v64
    %348 = vmatprep.subr.mxu0 0.0
    %349 = vmatpush1.msra.mxu0 %v63
    %350 = vmatprep.subr.mxu0 0.0
    %351 = vmatpush1.msra.mxu0 %v62
    %352 = vmatprep.subr.mxu0 0.0
    %353 = vmatpush1.msra.mxu0 %v61
    %354 = vmatprep.subr.mxu0 0.0
    %355 = vmatpush2.msra.mxu0 %v92
    %356 = vmatprep.subr.mxu0 0.0
    %357 = vmatpush2.msra.mxu0 %v91
    %358 = vmatprep.subr.mxu0 0.0
    %359 = vmatpush2.msra.mxu0 %v90
    %360 = vmatprep.subr.mxu0 0.0
    %361 = vmatpush2.msra.mxu0 %v89
    %362 = vmatprep.subr.mxu0 0.0
    %363 = vmatpush2.msra.mxu0 %v88
    %364 = vmatprep.subr.mxu0 0.0
    %365 = vmatpush2.msra.mxu0 %v87
    %366 = vmatprep.subr.mxu0 0.0
    %367 = vmatpush2.msra.mxu0 %v86
    %368 = vmatprep.subr.mxu0 0.0
    %369 = vmatpush2.msra.mxu0 %v85
    %370 = vmatprep.subr.mxu0 0.0
    %371 = vmatpush2.msra.mxu0 %v84
    %372 = vmatprep.subr.mxu0 0.0
    %373 = vmatpush2.msra.mxu0 %v83
    %374 = vmatprep.subr.mxu0 0.0
    %375 = vmatpush2.msra.mxu0 %v82
    %376 = vmatprep.subr.mxu0 0.0
    %377 = vmatpush2.msra.mxu0 %v81
    %378 = vmatprep.subr.mxu0 0.0
    %379 = vmatpush2.msra.mxu0 %v80
    %380 = vmatprep.subr.mxu0 0.0
    %381 = vmatpush2.msra.mxu0 %v79
    %382 = vmatprep.subr.mxu0 0.0
    %383 = vmatpush2.msra.mxu0 %v78
    %384 = vmatprep.subr.mxu0 0.0
    %385 = vmatpush2.msra.mxu0 %v77
    %386 = vmatprep.mubr.f32.mxu0 %v207
    %387 = vmatmul.mubr.f32.gmra.mxu0 %v206
    %v388 = vpop.f32.mrf.mxu0
    %v389 = vadd.f32 %v319, %v388
    %v390 = vpop.f32.mrf.mxu0
    %391 = vdwg.mxu0
    %392 = vmatprep.subr.mxu0 0.0
    %393 = vmatpush1.msra.mxu0 %v108
    %394 = vmatprep.subr.mxu0 0.0
    %395 = vmatpush1.msra.mxu0 %v107
    %396 = vmatprep.subr.mxu0 0.0
    %397 = vmatpush1.msra.mxu0 %v106
    %398 = vmatprep.subr.mxu0 0.0
    %399 = vmatpush1.msra.mxu0 %v105
    %400 = vmatprep.subr.mxu0 0.0
    %401 = vmatpush1.msra.mxu0 %v104
    %402 = vmatprep.subr.mxu0 0.0
    %403 = vmatpush1.msra.mxu0 %v103
    %404 = vmatprep.subr.mxu0 0.0
    %405 = vmatpush1.msra.mxu0 %v102
    %406 = vmatprep.subr.mxu0 0.0
    %407 = vmatpush1.msra.mxu0 %v101
    %408 = vmatprep.subr.mxu0 0.0
    %409 = vmatpush1.msra.mxu0 %v100
    %410 = vmatprep.subr.mxu0 0.0
    %411 = vmatpush1.msra.mxu0 %v99
    %412 = vmatprep.subr.mxu0 0.0
    %413 = vmatpush1.msra.mxu0 %v98
    %414 = vmatprep.subr.mxu0 0.0
    %415 = vmatpush1.msra.mxu0 %v97
    %416 = vmatprep.subr.mxu0 0.0
    %417 = vmatpush1.msra.mxu0 %v96
    %418 = vmatprep.subr.mxu0 0.0
    %419 = vmatpush1.msra.mxu0 %v95
    %420 = vmatprep.subr.mxu0 0.0
    %421 = vmatpush1.msra.mxu0 %v94
    %422 = vmatprep.subr.mxu0 0.0
    %423 = vmatpush1.msra.mxu0 %v93
    %424 = vmatprep.subr.mxu0 0.0
    %425 = vmatpush2.msra.mxu0 %v124
    %426 = vmatprep.subr.mxu0 0.0
    %427 = vmatpush2.msra.mxu0 %v123
    %428 = vmatprep.subr.mxu0 0.0
    %429 = vmatpush2.msra.mxu0 %v122
    %430 = vmatprep.subr.mxu0 0.0
    %431 = vmatpush2.msra.mxu0 %v121
    %432 = vmatprep.subr.mxu0 0.0
    %433 = vmatpush2.msra.mxu0 %v120
    %434 = vmatprep.subr.mxu0 0.0
    %435 = vmatpush2.msra.mxu0 %v119
    %436 = vmatprep.subr.mxu0 0.0
    %437 = vmatpush2.msra.mxu0 %v118
    %438 = vmatprep.subr.mxu0 0.0
    %439 = vmatpush2.msra.mxu0 %v117
    %440 = vmatprep.subr.mxu0 0.0
    %441 = vmatpush2.msra.mxu0 %v116
    %442 = vmatprep.subr.mxu0 0.0
    %443 = vmatpush2.msra.mxu0 %v115
    %444 = vmatprep.subr.mxu0 0.0
    %445 = vmatpush2.msra.mxu0 %v114
    %446 = vmatprep.subr.mxu0 0.0
    %447 = vmatpush2.msra.mxu0 %v113
    %448 = vmatprep.subr.mxu0 0.0
    %449 = vmatpush2.msra.mxu0 %v112
    %450 = vmatprep.subr.mxu0 0.0
    %451 = vmatpush2.msra.mxu0 %v111
    %452 = vmatprep.subr.mxu0 0.0
    %453 = vmatpush2.msra.mxu0 %v110
    %454 = vmatprep.subr.mxu0 0.0
    %455 = vmatpush2.msra.mxu0 %v109
    %456 = vmatprep.mubr.f32.mxu0 %v241
    %457 = vmatmul.mubr.f32.gmra.mxu0 %v240
    %v458 = vpop.f32.mrf.mxu0
    %v459 = vadd.f32 %v389, %v458
    %v460 = vpop.f32.mrf.mxu0
    %461 = vdwg.mxu0
    %462 = vmatprep.subr.mxu0 0.0
    %463 = vmatpush1.msra.mxu0 %v140
    %464 = vmatprep.subr.mxu0 0.0
    %465 = vmatpush1.msra.mxu0 %v139
    %466 = vmatprep.subr.mxu0 0.0
    %467 = vmatpush1.msra.mxu0 %v138
    %468 = vmatprep.subr.mxu0 0.0
    %469 = vmatpush1.msra.mxu0 %v137
    %470 = vmatprep.subr.mxu0 0.0
    %471 = vmatpush1.msra.mxu0 %v136
    %472 = vmatprep.subr.mxu0 0.0
    %473 = vmatpush1.msra.mxu0 %v135
    %474 = vmatprep.subr.mxu0 0.0
    %475 = vmatpush1.msra.mxu0 %v134
    %476 = vmatprep.subr.mxu0 0.0
    %477 = vmatpush1.msra.mxu0 %v133
    %478 = vmatprep.subr.mxu0 0.0
    %479 = vmatpush1.msra.mxu0 %v132
    %480 = vmatprep.subr.mxu0 0.0
    %481 = vmatpush1.msra.mxu0 %v131
    %482 = vmatprep.subr.mxu0 0.0
    %483 = vmatpush1.msra.mxu0 %v130
    %484 = vmatprep.subr.mxu0 0.0
    %485 = vmatpush1.msra.mxu0 %v129
    %486 = vmatprep.subr.mxu0 0.0
    %487 = vmatpush1.msra.mxu0 %v128
    %488 = vmatprep.subr.mxu0 0.0
    %489 = vmatpush1.msra.mxu0 %v127
    %490 = vmatprep.subr.mxu0 0.0
    %491 = vmatpush1.msra.mxu0 %v126
    %492 = vmatprep.subr.mxu0 0.0
    %493 = vmatpush1.msra.mxu0 %v125
    %494 = vmatprep.subr.mxu0 0.0
    %495 = vmatpush2.msra.mxu0 %v156
    %496 = vmatprep.subr.mxu0 0.0
    %497 = vmatpush2.msra.mxu0 %v155
    %498 = vmatprep.subr.mxu0 0.0
    %499 = vmatpush2.msra.mxu0 %v154
    %500 = vmatprep.subr.mxu0 0.0
    %501 = vmatpush2.msra.mxu0 %v153
    %502 = vmatprep.subr.mxu0 0.0
    %503 = vmatpush2.msra.mxu0 %v152
    %504 = vmatprep.subr.mxu0 0.0
    %505 = vmatpush2.msra.mxu0 %v151
    %506 = vmatprep.subr.mxu0 0.0
    %507 = vmatpush2.msra.mxu0 %v150
    %508 = vmatprep.subr.mxu0 0.0
    %509 = vmatpush2.msra.mxu0 %v149
    %510 = vmatprep.subr.mxu0 0.0
    %511 = vmatpush2.msra.mxu0 %v148
    %512 = vmatprep.subr.mxu0 0.0
    %513 = vmatpush2.msra.mxu0 %v147
    %514 = vmatprep.subr.mxu0 0.0
    %515 = vmatpush2.msra.mxu0 %v146
    %516 = vmatprep.subr.mxu0 0.0
    %517 = vmatpush2.msra.mxu0 %v145
    %518 = vmatprep.subr.mxu0 0.0
    %519 = vmatpush2.msra.mxu0 %v144
    %520 = vmatprep.subr.mxu0 0.0
    %521 = vmatpush2.msra.mxu0 %v143
    %522 = vmatprep.subr.mxu0 0.0
    %523 = vmatpush2.msra.mxu0 %v142
    %524 = vmatprep.subr.mxu0 0.0
    %525 = vmatpush2.msra.mxu0 %v141
    %526 = vmatprep.mubr.f32.mxu0 %v243
    %527 = vmatmul.mubr.f32.gmra.mxu0 %v242
    %v528 = vpop.f32.mrf.mxu0
    %v529 = vadd.f32 %v459, %v528
    %v530 = vpop.f32.mrf.mxu0
    %531 = vdwg.mxu0
    %v532 = vxor.u32 %v529, 2147483648
    %v533 = vmul.f32 %v532, 1.442695
    %v534 = vpow.pop %v533
    %v535 = vadd.f32 %v534, 1.0
    %v536 = vrcp.pop %v535
    %v537 = vmul.f32 1.0, %v536
    %v538 = vld [vmem:[%s3] sm:$0xff]
    %v539 = vld [vmem:[%s3 + $0x8] sm:$0xff]
    %v540 = vld [vmem:[%s3 + $0x10] sm:$0xff]
    %v541 = vld [vmem:[%s3 + $0x18] sm:$0xff]
    %v542 = vld [vmem:[%s4] sm:$0x1]
    %v544 = vlaneseq
    %v545 = vshrl.u32 %v544, 7
    %v546 = vsub.s32 0, %v545
    %v547 = vrot.slane %v542, %v546
    %vm549 = vcmask 261120
    %v551 = vsel %vm549, %v537, 0
    %553 = vmatprep.subr.mxu0 0.0
    %554 = vmatpush1.msra.mxu0 0.0
    %555 = vmatprep.subr.mxu0 0.0
    %556 = vmatpush1.msra.mxu0 0.0
    %557 = vmatprep.subr.mxu0 0.0
    %558 = vmatpush1.msra.mxu0 0.0
    %559 = vmatprep.subr.mxu0 0.0
    %560 = vmatpush1.msra.mxu0 0.0
    %561 = vmatprep.subr.mxu0 0.0
    %562 = vmatpush1.msra.mxu0 0.0
    %563 = vmatprep.subr.mxu0 0.0
    %564 = vmatpush1.msra.mxu0 0.0
    %565 = vmatprep.subr.mxu0 0.0
    %566 = vmatpush1.msra.mxu0 0.0
    %567 = vmatprep.subr.mxu0 0.0
    %568 = vmatpush1.msra.mxu0 0.0
    %569 = vmatprep.subr.mxu0 0.0
    %570 = vmatpush1.msra.mxu0 0.0
    %571 = vmatprep.subr.mxu0 0.0
    %572 = vmatpush1.msra.mxu0 0.0
    %573 = vmatprep.subr.mxu0 0.0
    %574 = vmatpush1.msra.mxu0 0.0
    %575 = vmatprep.subr.mxu0 0.0
    %576 = vmatpush1.msra.mxu0 0.0
    %577 = vmatprep.subr.mxu0 0.0
    %578 = vmatpush1.msra.mxu0 %v541
    %579 = vmatprep.subr.mxu0 0.0
    %580 = vmatpush1.msra.mxu0 %v540
    %581 = vmatprep.subr.mxu0 0.0
    %582 = vmatpush1.msra.mxu0 %v539
    %583 = vmatprep.subr.mxu0 0.0
    %584 = vmatpush1.msra.mxu0 %v538
    %585 = vmatprep.subr.mxu0 0.0
    %586 = vmatpush2.msra.mxu0 0.0
    %587 = vmatprep.subr.mxu0 0.0
    %588 = vmatpush2.msra.mxu0 0.0
    %589 = vmatprep.subr.mxu0 0.0
    %590 = vmatpush2.msra.mxu0 0.0
    %591 = vmatprep.subr.mxu0 0.0
    %592 = vmatpush2.msra.mxu0 0.0
    %593 = vmatprep.subr.mxu0 0.0
    %594 = vmatpush2.msra.mxu0 0.0
    %595 = vmatprep.subr.mxu0 0.0
    %596 = vmatpush2.msra.mxu0 0.0
    %597 = vmatprep.subr.mxu0 0.0
    %598 = vmatpush2.msra.mxu0 0.0
    %599 = vmatprep.subr.mxu0 0.0
    %600 = vmatpush2.msra.mxu0 0.0
    %601 = vmatprep.subr.mxu0 0.0
    %602 = vmatpush2.msra.mxu0 0.0
    %603 = vmatprep.subr.mxu0 0.0
    %604 = vmatpush2.msra.mxu0 0.0
    %605 = vmatprep.subr.mxu0 0.0
    %606 = vmatpush2.msra.mxu0 0.0
    %607 = vmatprep.subr.mxu0 0.0
    %608 = vmatpush2.msra.mxu0 0.0
    %609 = vmatprep.subr.mxu0 0.0
    %610 = vmatpush2.msra.mxu0 0.0
    %611 = vmatprep.subr.mxu0 0.0
    %612 = vmatpush2.msra.mxu0 0.0
    %613 = vmatprep.subr.mxu0 0.0
    %614 = vmatpush2.msra.mxu0 0.0
    %615 = vmatprep.subr.mxu0 0.0
    %616 = vmatpush2.msra.mxu0 0.0
    %617 = vmatprep.mubr.f32.mxu0 0.0
    %618 = vmatmul.mubr.f32.gmra.mxu0 %v551
    %v619 = vpop.f32.mrf.mxu0
    %v620 = vadd.f32 %v547, %v619
    %v621 = vpop.f32.mrf.mxu0
    %622 = vdwg.mxu0
    %623 = vst [vmem:[#allocation2] sm:$0xff] %v620
    // Predicated region
    $region22: #{tpu_custom_call.1} parent=1 // pred_check
      _
    $region23: #{tpu_custom_call.1} parent=1 // pred_check_branch
      %625 = sbr.rel (0) target = $region25
    $region24: #{tpu_custom_call.1} parent=1 // pred_region
      %s627 = ssub.s32 128, 32
      %628 = vsyncadd [#allocation3], %s627
      %s629 = sshll.u32 [#allocation2], 4
      %s630 = int_to_ptr.vmem [resolvable:$true] %s629
      %635 = dma.vmem_to_hbm [thread:$0]  %s630, 32, %s5, [#allocation3], 32, 32, 2
    $region25: #{tpu_custom_call.1} parent=1 // pred_fallthru
      _
    // Predicated region
    $region26: #{tpu_custom_call.1} parent=1 // pred_check
      _
    $region27: #{tpu_custom_call.1} parent=1 // pred_check_branch
      %637 = sbr.rel (0) target = $region29
    $region28: #{tpu_custom_call.1} parent=1 // pred_region
      %638 = dma.done [#allocation3], 128
    $region29: #{tpu_custom_call.1} parent=1 // pred_fallthru
      _
    %639 = vsyncpa [#allocation3], 1

</llo_original>
